<compile_context>
chip_gen: v7x
topology: tpu7x:2x2x1
jax: 0.10.0
libtpu: 0.0.40
codegen_flags: <defaults>
</compile_context>

<pallas_src>
import functools

import jax
import jax.numpy as jnp
from jax.experimental import pallas as pl
from jax.experimental.pallas import tpu as pltpu

N_TASKS = 5      # Loss_w has a fixed 5-element weight parameter
LANES = 128      # lane-dense tile width


def _loss_w_kernel(packed_ref, out_ref):
    # packed_ref: (2, 128) f32 in VMEM. Row 0 = w (zero-padded), row 1 = loss.
    lane = jax.lax.broadcasted_iota(jnp.int32, (1, LANES), 1)
    valid = lane < N_TASKS

    w = packed_ref[0:1, :]       # (1, 128)
    loss = packed_ref[1:2, :]    # (1, 128)

    # softmax(tanh(w), dim=0) over the 5 valid lanes; padded lanes -> -inf so
    # they contribute exp(-inf) = 0 to the normalizer.
    t = jnp.where(valid, jnp.tanh(w), -jnp.inf)
    m = jnp.max(t, axis=-1, keepdims=True)
    e = jnp.exp(t - m)
    s = jnp.sum(e, axis=-1, keepdims=True)
    sm = e / s                   # exact divide (keep accuracy; cost is nil here)

    # final_loss = sum(loss * w); padded lanes are 0 in both factors.
    final = jnp.sum(loss * sm, axis=-1, keepdims=True)   # (1, 1)

    # Single unmasked 128-wide store: lanes 0..4 = weights, lane 5 = final loss.
    out_ref[...] = jnp.where(lane == N_TASKS, final, sm)


@functools.partial(jax.jit)
def loss_w_forward(w_param, loss):
    """w_param: (5,) f32 parameter; loss: (5,) f32 per-task losses.

    Returns (final_loss: scalar f32, w: (5,) f32) matching PyTorch Loss_w.forward.
    """
    n = w_param.shape[0]
    stacked = jnp.stack(
        [w_param.astype(jnp.float32), loss.astype(jnp.float32)]
    )                                                    # (2, n)
    packed = jnp.pad(stacked, ((0, 0), (0, LANES - n)))  # (2, 128), single DMA

    out = pl.pallas_call(
        _loss_w_kernel,
        out_shape=jax.ShapeDtypeStruct((1, LANES), jnp.float32),
        in_specs=[pl.BlockSpec(memory_space=pltpu.VMEM)],
        out_specs=pl.BlockSpec(memory_space=pltpu.VMEM),
    )(packed)

    w_out = out[0, :n]
    final = out[0, n]
    return final, w_out


if __name__ == "__main__":
    # Parameter init matches nn.Parameter(torch.Tensor([1]*5)) -> ones(5)
    w_param = jnp.ones((N_TASKS,), dtype=jnp.float32)

    key = jax.random.PRNGKey(0)
    loss = jax.random.uniform(key, (N_TASKS,), dtype=jnp.float32)  # synthetic per-task losses

    final_loss, w = loss_w_forward(w_param, loss)
    jax.block_until_ready((final_loss, w))

    # Pure-JAX reference check
    w_ref = jax.nn.softmax(jnp.tanh(w_param), axis=0)
    final_ref = jnp.sum(loss * w_ref, axis=0)
    assert jnp.allclose(w, w_ref, atol=1e-6), (w, w_ref)
    assert jnp.allclose(final_loss, final_ref, atol=1e-6), (final_loss, final_ref)

    print("KERNEL_OK")
</pallas_src>

<mosaic_0001>
module attributes {stable_mosaic.version = 11 : i64} {
  func.func @_loss_w_kernel(%arg0: memref<2x128xf32, #tpu.memory_space<vmem>>, %arg1: memref<1x128xf32, #tpu.memory_space<vmem>>) attributes {dimension_semantics = [], scalar_prefetch = 0 : i64, scratch_operands = 0 : i64, tpu.core_type = #tpu.core_type<tc>} {
    %0 = tpu.iota {dimensions = array<i32: 1>} : vector<1x128xi32>
    %c5_i32 = arith.constant 5 : i32
    %1 = vector.broadcast %c5_i32 : i32 to vector<1x128xi32>
    %2 = arith.cmpi slt, %0, %1 : vector<1x128xi32>
    %c0 = arith.constant 0 : index
    %c0_0 = arith.constant 0 : index
    %3 = vector.load %arg0[%c0, %c0_0] : memref<2x128xf32, #tpu.memory_space<vmem>>, vector<1x128xf32>
    %c1 = arith.constant 1 : index
    %c0_1 = arith.constant 0 : index
    %4 = vector.load %arg0[%c1, %c0_1] : memref<2x128xf32, #tpu.memory_space<vmem>>, vector<1x128xf32>
    %5 = math.tanh %3 : vector<1x128xf32>
    %cst = arith.constant 0xFF800000 : f32
    %6 = vector.broadcast %cst : f32 to vector<1x128xf32>
    %7 = arith.select %2, %5, %6 : vector<1x128xi1>, vector<1x128xf32>
    %cst_2 = arith.constant dense<0xFF800000> : vector<1xf32>
    %8 = vector.multi_reduction <maximumf>, %7, %cst_2 [1] : vector<1x128xf32> to vector<1xf32>
    %9 = vector.shape_cast %8 : vector<1xf32> to vector<1x1xf32>
    %10 = vector.broadcast %9 : vector<1x1xf32> to vector<1x128xf32>
    %11 = arith.subf %7, %10 : vector<1x128xf32>
    %12 = math.exp %11 : vector<1x128xf32>
    %cst_3 = arith.constant dense<0.000000e+00> : vector<1xf32>
    %13 = vector.multi_reduction <add>, %12, %cst_3 [1] : vector<1x128xf32> to vector<1xf32>
    %14 = vector.shape_cast %13 : vector<1xf32> to vector<1x1xf32>
    %15 = vector.broadcast %14 : vector<1x1xf32> to vector<1x128xf32>
    %16 = arith.divf %12, %15 : vector<1x128xf32>
    %17 = arith.mulf %4, %16 : vector<1x128xf32>
    %cst_4 = arith.constant dense<0.000000e+00> : vector<1xf32>
    %18 = vector.multi_reduction <add>, %17, %cst_4 [1] : vector<1x128xf32> to vector<1xf32>
    %19 = vector.shape_cast %18 : vector<1xf32> to vector<1x1xf32>
    %c5_i32_5 = arith.constant 5 : i32
    %20 = vector.broadcast %c5_i32_5 : i32 to vector<1x128xi32>
    %21 = arith.cmpi eq, %0, %20 : vector<1x128xi32>
    %22 = vector.shape_cast %19 : vector<1x1xf32> to vector<1x1xf32>
    %23 = vector.broadcast %22 : vector<1x1xf32> to vector<1x128xf32>
    %24 = arith.select %21, %23, %16 : vector<1x128xi1>, vector<1x128xf32>
    %c0_6 = arith.constant 0 : index
    %c0_7 = arith.constant 0 : index
    %25 = vector.load %arg1[%c0_6, %c0_7] : memref<1x128xf32, #tpu.memory_space<vmem>>, vector<1x128xf32>
    tpu.vector_store %arg1[%c0_6, %c0_7], %24 {strides = array<i32>} : memref<1x128xf32, #tpu.memory_space<vmem>>, vector<1x128xf32>,
    return
  }
}

</mosaic_0001>

<llo_original>
// kernel: loss_w_forward.1
$region0: #{loss_w_forward.1}
  #allocation0 [shape = 'u32[]', space=smem, size = 0x4, offset = 0x4, fixed_abs, tag = 'smem constant byte address 0x4 - core index']
  #allocation1 [shape = 'u32[144,128]{1,0:T(1,128)}', space=vmem, size = 0x12000, scoped, tag = 'internal scratch']
  %s0 = inlined_call_operand.vmem [shape: f32[2,128], index: 0, kind: input, shape index: {}]
  %s1 = inlined_call_operand.vmem [shape: f32[1,128], index: 1, kind: output, shape index: {}]
  %s2 = sld [smem:[#allocation0]]
  $region14: #{loss_w_forward.1} parent=0
    _
  %s4 = ssub.s32 1, %s2
  %s5 = scalar_select 0, %s4, %s2
  // Predicated region
  $region2: #{loss_w_forward.1} parent=0 // pred_check
    _
  $region3: #{loss_w_forward.1} parent=0 // pred_check_branch
    %7 = sbr.rel (0) target = $region5
  $region4: #{loss_w_forward.1} parent=0 // pred_region
    _
  $region5: #{loss_w_forward.1} parent=0 // pred_fallthru
    _
  %v8 = vlaneseq
  %v9 = vand.u32 %v8, 127
  %vm10 = vcmp.lt.s32.totalorder %v9, 5
  %v11 = vld [vmem:[%s0] sm:$0x1]
  %v12 = vld [vmem:[%s0 + $0x1] sm:$0x1]
  %v13 = vtanh.pop %v11
  %v14 = vsel %vm10, %v13, -inf
  %vm15 = vcmask 1040384
  %v16 = vsel %vm15, %v14, -inf
  %17 = vmax.xlane.f32.xlu0 %v16
  %v18 = vpop.xlane.xlu0 %17
  %v19 = vsub.f32 %v14, %v18
  %v20 = vmul.f32 %v19, 1.442695
  %v21 = vpow.pop %v20
  %v22 = vsel %vm15, %v21, 0.0
  %23 = vadd.xlane.f32.xlu0 %v22
  %v24 = vpop.xlane.xlu0 %23
  %v25 = vrcp.pop %v24
  %v26 = vmul.f32 %v21, %v25
  %v27 = vmul.f32 %v12, %v26
  %v28 = vsel %vm15, %v27, 0.0
  %29 = vadd.xlane.f32.xlu0 %v28
  %v30 = vpop.xlane.xlu0 %29
  %vm31 = vcmp.eq.s32.totalorder %v9, 5
  %v32 = vsel %vm31, %v30, %v26
  %33 = vst [vmem:[%s1] sm:$0x1] %v32
  // Predicated region
  $region6: #{loss_w_forward.1} parent=0 // pred_check
    _
  $region7: #{loss_w_forward.1} parent=0 // pred_check_branch
    %35 = sbr.rel (0) target = $region9
  $region8: #{loss_w_forward.1} parent=0 // pred_region
    _
  $region9: #{loss_w_forward.1} parent=0 // pred_fallthru
    _
  // Predicated region
  $region10: #{loss_w_forward.1} parent=0 // pred_check
    _
  $region11: #{loss_w_forward.1} parent=0 // pred_check_branch
    %37 = sbr.rel (0) target = $region13
  $region12: #{loss_w_forward.1} parent=0 // pred_region
    _
  $region13: #{loss_w_forward.1} parent=0 // pred_fallthru
    _

</llo_original>
